<compile_context>
chip_gen: v7x
topology: tpu7x:2x2x1
jax: 0.10.0
libtpu: 0.0.40
codegen_flags: <defaults>
</compile_context>

<pallas_src>
import functools

import jax
import jax.numpy as jnp
from jax.experimental import pallas as pl
from jax.experimental.pallas import tpu as pltpu


def _round_up(x, m):
    return ((x + m - 1) // m) * m


@functools.cache
def _roll_is_numpy_convention():
    """Empirically determine pltpu.roll's rotation direction once per process.

    Returns True iff pltpu.roll(x, s)[k] == x[(k - s) % N] (np.roll convention).
    A tiny one-shot (8,128) kernel; keeps the main kernel correct under either
    sign convention across JAX versions.
    """

    def kernel(x_ref, o_ref):
        o_ref[...] = pltpu.roll(x_ref[...], 1, axis=1)

    x = jax.lax.broadcasted_iota(jnp.float32, (8, 128), 1)
    y = pl.pallas_call(
        kernel, out_shape=jax.ShapeDtypeStruct((8, 128), jnp.float32)
    )(x)
    return bool(y[0, 1] == 0.0)


def _src_shift(offset, size, numpy_conv):
    """Roll amount s such that roll(x, s)[k] == x[(k + offset) % size]."""
    if numpy_conv:
        return (-offset) % size
    return offset % size


def _build_kernel(H, W, hflip, numpy_conv):
    HW = H * W

    def kernel(params_ref, x_ref, o_ref):
        # params (SMEM, int32): [flip, roll_amount, dy, dx]
        flip = params_ref[0]
        roll_amt = params_ref[1]
        dy = params_ref[2]
        dx = params_ref[3]

        # Flattened lane index and (row, col) inside each H*W image.
        lane = jax.lax.broadcasted_iota(jnp.int32, (1, HW), 1)
        row = lane // W
        col = lane % W

        # RandomCrop(padding=pad): out[i, j] = src[i+dy, j+dx], 0 outside.
        # On the flattened row that is one rotation by dy*W+dx plus a border
        # mask for positions whose source lands in the zero padding.  The
        # identical rotation/mask also covers the flipped branch because the
        # in-kernel reversal is applied *before* the rotation.
        src_r = row + dy
        src_c = col + dx
        in_bounds = (src_r >= 0) & (src_r < H) & (src_c >= 0) & (src_c < W)

        def finish(base):
            # TODO(synk): non-128-multiple H*W (e.g. mnist 28*28) relies on
            # Mosaic handling unaligned dynamic lane rotates; cifar (1024) is
            # fully aligned.
            shifted = pltpu.roll(base, roll_amt, axis=1)
            o_ref[...] = jnp.where(
                in_bounds, shifted, jnp.zeros_like(shifted)
            ).astype(o_ref.dtype)

        if hflip:
            @pl.when(flip == 0)
            def _():
                finish(x_ref[...])

            @pl.when(flip != 0)
            def _():
                # Horizontal flip = reverse each aligned W-wide lane segment.
                # W is a power of two, so (W-1-j) == j ^ (W-1): compose
                # log2(W) "swap elements at distance d" stages (XLU rolls).
                y = x_ref[...]
                d = W // 2
                while d >= 1:
                    fwd = pltpu.roll(y, _src_shift(d, HW, numpy_conv), axis=1)
                    bwd = pltpu.roll(y, _src_shift(-d, HW, numpy_conv), axis=1)
                    y = jnp.where((lane & d) == 0, fwd, bwd)
                    d //= 2
                finish(y)
        else:
            finish(x_ref[...])

    return kernel


def _apply_transform(x, flip, top, left, pad, hflip):
    """Apply flip+crop with explicit parameters via the Pallas kernel."""
    B, C, H, W = x.shape
    HW = H * W
    n_rows = B * C
    x2d = x.reshape(n_rows, HW)

    numpy_conv = _roll_is_numpy_convention()

    flip = jnp.asarray(flip, jnp.int32) if hflip else jnp.int32(0)
    dy = jnp.asarray(top, jnp.int32) - pad
    dx = jnp.asarray(left, jnp.int32) - pad
    roll_amt = jnp.asarray(_src_shift(dy * W + dx, HW, numpy_conv), jnp.int32)
    params = jnp.stack([flip, roll_amt, dy, dx]).astype(jnp.int32)

    # Row tile: multiple of 8, capped at 256 rows (~1 MiB f32 per buffer for
    # cifar), and split so there are >=2 grid steps when enough rows exist
    # (keeps both TensorCores busy via dimension_semantics="parallel").
    if n_rows <= 8:
        tr = 8
    else:
        tr = max(8, min(256, _round_up(pl.cdiv(n_rows, 2), 8)))
    grid = (pl.cdiv(n_rows, tr),)

    kernel = _build_kernel(H, W, hflip, numpy_conv)

    out2d = pl.pallas_call(
        kernel,
        out_shape=jax.ShapeDtypeStruct((n_rows, HW), x.dtype),
        grid_spec=pltpu.PrefetchScalarGridSpec(
            num_scalar_prefetch=1,
            grid=grid,
            in_specs=[pl.BlockSpec((tr, HW), lambda i, p: (i, 0))],
            out_specs=pl.BlockSpec((tr, HW), lambda i, p: (i, 0)),
        ),
        compiler_params=pltpu.CompilerParams(
            dimension_semantics=("parallel",),
            vmem_limit_bytes=32 * 1024 * 1024,
        ),
    )(params, x2d)
    return out2d.reshape(B, C, H, W)


def _sample_params(key, pad, hflip_prob):
    """One augmentation parameter set per forward call (applied to the batch)."""
    k_flip, k_top, k_left = jax.random.split(key, 3)
    flip = (jax.random.uniform(k_flip, (), jnp.float32) < hflip_prob).astype(jnp.int32)
    top = jax.random.randint(k_top, (), 0, 2 * pad + 1, dtype=jnp.int32)
    left = jax.random.randint(k_left, (), 0, 2 * pad + 1, dtype=jnp.int32)
    return flip, top, left


def post_tensor_transform(x, key, dataset_name="cifar10", pad=4):
    """PostTensorTransform.forward: [RandomHorizontalFlip(0.5)] + RandomCrop(pad=4)."""
    _, _, _, W = x.shape
    hflip = dataset_name in ("cifar10", "cifar100")
    if hflip and (W & (W - 1)) != 0:
        # TODO(synk): the in-kernel lane reverse assumes power-of-two W; the
        # datasets that enable the flip (cifar*) have W=32, so this never trips.
        raise NotImplementedError("horizontal flip requires power-of-two width")
    flip, top, left = _sample_params(key, pad, 0.5 if hflip else 0.0)
    return _apply_transform(x, flip, top, left, pad, hflip)


def _reference(x, flip, top, left, pad):
    """Pure-JAX reference: flip(p) then zero-pad + crop at (top, left)."""
    xf = jnp.where(jnp.asarray(flip) > 0, jnp.flip(x, axis=-1), x)
    xp = jnp.pad(xf, ((0, 0), (0, 0), (pad, pad), (pad, pad)))
    starts = (jnp.int32(0), jnp.int32(0),
              jnp.asarray(top, jnp.int32), jnp.asarray(left, jnp.int32))
    return jax.lax.dynamic_slice(xp, starts, x.shape)


if __name__ == "__main__":
    key = jax.random.PRNGKey(0)
    k_x, k_aug = jax.random.split(key)

    B, C, H, W = 4, 3, 32, 32  # small cifar10-like batch
    PAD = 4
    x = jax.random.normal(k_x, (B, C, H, W), dtype=jnp.float32)

    # Exercise both branches and asymmetric crop offsets against the reference.
    for flip_v, top_v, left_v in [(1, 4, 4), (0, 0, 8), (1, 7, 2)]:
        got = _apply_transform(
            x, jnp.int32(flip_v), jnp.int32(top_v), jnp.int32(left_v), PAD, True
        )
        got = jax.block_until_ready(got)
        want = _reference(x, flip_v, top_v, left_v, PAD)
        assert jnp.allclose(got, want, atol=1e-6), (flip_v, top_v, left_v)

    # The actual module forward: parameters drawn from the key at call time.
    out = post_tensor_transform(x, k_aug, dataset_name="cifar10", pad=PAD)
    out = jax.block_until_ready(out)

    flip, top, left = _sample_params(k_aug, PAD, 0.5)
    ref = _reference(x, flip, top, left, PAD)
    assert out.shape == x.shape and out.dtype == x.dtype
    assert jnp.allclose(out, ref, atol=1e-6), "mismatch vs reference"

    print("KERNEL_OK")
</pallas_src>

<mosaic_0001>
module attributes {stable_mosaic.version = 11 : i64} {
  func.func @kernel(%arg0: memref<8x128xf32, #tpu.memory_space<vmem>>, %arg1: memref<8x128xf32, #tpu.memory_space<vmem>>) attributes {dimension_semantics = [], scalar_prefetch = 0 : i64, scratch_operands = 0 : i64, tpu.core_type = #tpu.core_type<tc>} {
    %c0 = arith.constant 0 : index
    %c0_0 = arith.constant 0 : index
    %0 = vector.load %arg0[%c0, %c0_0] : memref<8x128xf32, #tpu.memory_space<vmem>>, vector<8x128xf32>
    %c1_i32 = arith.constant 1 : i32
    %1 = tpu.dynamic_rotate %0 by %c1_i32 dim 1 : vector<8x128xf32>, i32 -> vector<8x128xf32>
    %c0_1 = arith.constant 0 : index
    %c0_2 = arith.constant 0 : index
    %2 = vector.load %arg1[%c0_1, %c0_2] : memref<8x128xf32, #tpu.memory_space<vmem>>, vector<8x128xf32>
    tpu.vector_store %arg1[%c0_1, %c0_2], %1 {strides = array<i32>} : memref<8x128xf32, #tpu.memory_space<vmem>>, vector<8x128xf32>,
    return
  }
}

</mosaic_0001>

<llo_original>
// kernel: tpu_custom_call.1
$region0: #{tpu_custom_call.1}
  #allocation0 [shape = 'u32[]', space=smem, size = 0x4, offset = 0x4, fixed_abs, tag = 'smem constant byte address 0x4 - core index']
  #allocation1 [shape = 'u32[144,128]{1,0:T(1,128)}', space=vmem, size = 0x12000, scoped, tag = 'internal scratch']
  %s0 = inlined_call_operand.hbm [shape: f32[8,128], index: 0, kind: input, shape index: {}]
  %s1 = inlined_call_operand.hbm [shape: f32[8,128], index: 1, kind: output, shape index: {}]
  %s2 = sld [smem:[#allocation0]]
  $region18: #{tpu_custom_call.1} parent=0
    _
  %s4 = ssub.s32 1, %s2
  %s5 = scalar_select 0, %s4, %s2
  $region1: #{tpu_custom_call.1} parent=0
    #allocation2 [shape = 'u8[4096]{0}', space=vmem, size = 0x1000, scoped, tag = 'input window, operand 0, single buffered']
    #allocation3 [shape = 's32[1]{0}', space=sflag, size = 0x4, scoped, tag = 'scoped memory for tpu_custom_call.1']
    #allocation4 [shape = 's32[1]{0}', space=sflag, size = 0x4, scoped, tag = 'scoped memory for tpu_custom_call.1']
    #allocation5 [shape = 'u8[4096]{0}', space=vmem, size = 0x1000, scoped, tag = 'output window, operand 0, single buffered']
    %6 = vsyncpa [#allocation3], 0
    %7 = vsyncpa [#allocation4], 0
    // Predicated region
    $region2: #{tpu_custom_call.1} parent=1 // pred_check
      _
    $region3: #{tpu_custom_call.1} parent=1 // pred_check_branch
      %9 = sbr.rel (0) target = $region5
    $region4: #{tpu_custom_call.1} parent=1 // pred_region
      %s11 = ssub.s32 128, 128
      %12 = vsyncadd [#allocation3], %s11
      %s14 = sshll.u32 [#allocation2], 4
      %s15 = int_to_ptr.vmem [resolvable:$true] %s14
      %17 = dma.hbm_to_vmem [thread:$0]  %s0, 128, %s15, [#allocation3]
    $region5: #{tpu_custom_call.1} parent=1 // pred_fallthru
      _
    // Predicated region
    $region6: #{tpu_custom_call.1} parent=1 // pred_check
      _
    $region7: #{tpu_custom_call.1} parent=1 // pred_check_branch
      %19 = sbr.rel (0) target = $region9
    $region8: #{tpu_custom_call.1} parent=1 // pred_region
      %20 = dma.done [#allocation3], 128
    $region9: #{tpu_custom_call.1} parent=1 // pred_fallthru
      _
    %v21 = vld [vmem:[#allocation2] sm:$0xff]
    %22 = vrot.lane.b32.xlu0 %v21, 1
    %v23 = vpop.permute.xlu0 %22
    %24 = vst [vmem:[#allocation5] sm:$0xff] %v23
    // Predicated region
    $region10: #{tpu_custom_call.1} parent=1 // pred_check
      _
    $region11: #{tpu_custom_call.1} parent=1 // pred_check_branch
      %26 = sbr.rel (0) target = $region13
    $region12: #{tpu_custom_call.1} parent=1 // pred_region
      %s28 = ssub.s32 128, 128
      %29 = vsyncadd [#allocation4], %s28
      %s31 = sshll.u32 [#allocation5], 4
      %s32 = int_to_ptr.vmem [resolvable:$true] %s31
      %34 = dma.vmem_to_hbm [thread:$0]  %s32, 128, %s1, [#allocation4]
    $region13: #{tpu_custom_call.1} parent=1 // pred_fallthru
      _
    // Predicated region
    $region14: #{tpu_custom_call.1} parent=1 // pred_check
      _
    $region15: #{tpu_custom_call.1} parent=1 // pred_check_branch
      %36 = sbr.rel (0) target = $region17
    $region16: #{tpu_custom_call.1} parent=1 // pred_region
      %37 = dma.done [#allocation4], 128
    $region17: #{tpu_custom_call.1} parent=1 // pred_fallthru
      _
    %38 = vsyncpa [#allocation3], 1
    %39 = vsyncpa [#allocation4], 1

</llo_original>
